<compile_context>
chip_gen: v5e
topology: v5e:2x2
jax: 0.10.0
libtpu: 0.0.40
codegen_flags: <defaults>
</compile_context>

<pallas_src>
import functools

import jax
import jax.numpy as jnp
from jax import lax
from jax.experimental import pallas as pl
from jax.experimental.pallas import tpu as pltpu

PAD = 128  # lane width used for the fused carry / step matrices


def rnn_wave_kernel(x_ref, w_in_ref, b1_ref, b2_ref, w_step_ref, out_ref,
                    *, hidden, output):
    T = x_ref.shape[0]
    H, O = hidden, output

    # Layer-1 input projection for all timesteps in one lane-dense MXU matmul.
    #   xp[s] = [ x_s @ W_ih1^T + (b_ih1+b_hh1) | 0 | 0 ]   -> (T, 128)
    xp = jnp.dot(x_ref[...], w_in_ref[...],
                 preferred_element_type=jnp.float32) + b1_ref[...]
    b2 = b2_ref[...]                       # (1, 128) = [ 0 | b_ih2+b_hh2 | 0 ]

    # Wave step 0: carry c_1 = [h1_0 | h2_{-1}=0 | 0]  (all recurrent terms are 0).
    c = jnp.tanh(xp[0:1, :])

    # Wave steps 1..T, fully unrolled (static trip count).  Each step issues a
    # single dependent (1,256)x(256,128) matmul: [c | tanh(c)] @ W_step fuses the
    # layer-1 recurrence, layer-2 recurrence and layer-2 input projection.
    # New carry c_{s+1} = tanh(pre) = [h1_s | h2_{s-1} | 0].
    rows = []
    for s in range(1, T + 1):
        xb = (xp[s:s + 1, :] + b2) if s < T else b2          # additive per-step term
        ce = jnp.concatenate([c, jnp.tanh(c)], axis=1)       # (1, 256), lane-aligned
        pre = xb + jnp.dot(ce, w_step_ref[...],
                           preferred_element_type=jnp.float32)
        c = jnp.tanh(pre)
        rows.append(c)                                       # c[:, H:H+O] == h2_{s-1}

    out_full = jnp.concatenate(rows, axis=0)                 # (T, 128), in vregs
    out_ref[...] = out_full[:, H:H + O]                      # single block store


def prepare_rnn_params(params, pad=PAD):
    """Transpose / pad / fuse the PyTorch-shaped weights ONCE (call outside the hot path)."""
    H, I = params["w_ih1"].shape
    O = params["w_ih2"].shape[0]
    assert H + O <= pad

    # Input-projection weight, padded to 128 output lanes: cols 0:H = W_ih1^T.
    w_in = jnp.zeros((I, pad), jnp.float32).at[:, :H].set(params["w_ih1"].T)
    # Folded biases, laid out in the fused carry space [h1 | h2 | pad].
    b1 = jnp.zeros((1, pad), jnp.float32).at[0, :H].set(
        params["b_ih1"] + params["b_hh1"])
    b2 = jnp.zeros((1, pad), jnp.float32).at[0, H:H + O].set(
        params["b_ih2"] + params["b_hh2"])

    # Fused step matrix for [c | tanh(c)] @ W_step with c = [h1 | h2 | pad]:
    #   rows 0:H         (h1)       -> cols 0:H    : W_hh1^T  (layer-1 recurrence)
    #   rows H:H+O       (h2)       -> cols H:H+O  : W_hh2^T  (layer-2 recurrence)
    #   rows pad:pad+H   (tanh(h1)) -> cols H:H+O  : W_ih2^T  (layer-2 input proj)
    w_step = jnp.zeros((2 * pad, pad), jnp.float32)
    w_step = w_step.at[0:H, 0:H].set(params["w_hh1"].T)
    w_step = w_step.at[H:H + O, H:H + O].set(params["w_hh2"].T)
    w_step = w_step.at[pad:pad + H, H:H + O].set(params["w_ih2"].T)

    return {"w_in": w_in, "b1": b1, "b2": b2, "w_step": w_step,
            "input": I, "hidden": H, "output": O}


def rnn_forward(x, prep):
    """x: (T, 784) float32; prep: output of prepare_rnn_params()."""
    I, H, O = prep["input"], prep["hidden"], prep["output"]
    x = x.reshape(-1, I).astype(jnp.float32)      # input.view(-1, 28*28)
    T = x.shape[0]

    vmem = pl.BlockSpec(memory_space=pltpu.MemorySpace.VMEM)
    kernel = functools.partial(rnn_wave_kernel, hidden=H, output=O)
    return pl.pallas_call(
        kernel,
        out_shape=jax.ShapeDtypeStruct((T, O), jnp.float32),
        in_specs=[vmem] * 5,
        out_specs=vmem,
    )(x, prep["w_in"], prep["b1"], prep["b2"], prep["w_step"])


def rnn_reference(x, params):
    """Pure-JAX reference (matches PyTorch nn.RNN unbatched forward)."""
    def cell(w_ih, w_hh, b_ih, b_hh, xs):
        def step(h, x_t):
            h_new = jnp.tanh(x_t @ w_ih.T + b_ih + h @ w_hh.T + b_hh)
            return h_new, h_new
        _, ys = lax.scan(step, jnp.zeros((w_ih.shape[0],), jnp.float32), xs)
        return ys

    y1 = cell(params["w_ih1"], params["w_hh1"], params["b_ih1"], params["b_hh1"], x)
    y1 = jnp.tanh(y1)
    y2 = cell(params["w_ih2"], params["w_hh2"], params["b_ih2"], params["b_hh2"], y1)
    return y2


def init_params(key, I, H, O):
    """Deterministic init mimicking PyTorch nn.RNN uniform(-1/sqrt(H), 1/sqrt(H))."""
    ks = jax.random.split(key, 8)
    s1 = 1.0 / jnp.sqrt(H)
    s2 = 1.0 / jnp.sqrt(O)
    u = lambda k, shape, s: jax.random.uniform(k, shape, jnp.float32, -s, s)
    return {
        "w_ih1": u(ks[0], (H, I), s1), "w_hh1": u(ks[1], (H, H), s1),
        "b_ih1": u(ks[2], (H,), s1),   "b_hh1": u(ks[3], (H,), s1),
        "w_ih2": u(ks[4], (O, H), s2), "w_hh2": u(ks[5], (O, O), s2),
        "b_ih2": u(ks[6], (O,), s2),   "b_hh2": u(ks[7], (O,), s2),
    }


if __name__ == "__main__":
    # seq=8, input=28*28 (required by view), hidden=32, output=16
    T, I, H, O = 8, 784, 32, 16

    key = jax.random.PRNGKey(0)
    kx, kp = jax.random.split(key)
    x = jax.random.normal(kx, (T, I), dtype=jnp.float32)
    params = init_params(kp, I, H, O)

    # One-time weight preparation (transpose / pad / fuse) outside the hot path.
    prep = jax.tree_util.tree_map(jax.block_until_ready, prepare_rnn_params(params))

    out = jax.block_until_ready(rnn_forward(x, prep))

    ref = jax.block_until_ready(rnn_reference(x, params))
    assert out.shape == (T, O)
    assert jnp.allclose(out, ref, atol=2e-5, rtol=1e-5), "mismatch vs reference"

    print("KERNEL_OK")
</pallas_src>

<mosaic_0001>
module attributes {stable_mosaic.version = 11 : i64} {
  func.func @rnn_wave_kernel(%arg0: memref<8x784xf32, #tpu.memory_space<vmem>>, %arg1: memref<784x128xf32, #tpu.memory_space<vmem>>, %arg2: memref<1x128xf32, #tpu.memory_space<vmem>>, %arg3: memref<1x128xf32, #tpu.memory_space<vmem>>, %arg4: memref<256x128xf32, #tpu.memory_space<vmem>>, %arg5: memref<8x16xf32, #tpu.memory_space<vmem>>) attributes {dimension_semantics = [], scalar_prefetch = 0 : i64, scratch_operands = 0 : i64, tpu.core_type = #tpu.core_type<tc>} {
    %c0 = arith.constant 0 : index
    %c0_0 = arith.constant 0 : index
    %0 = vector.load %arg0[%c0, %c0_0] : memref<8x784xf32, #tpu.memory_space<vmem>>, vector<8x784xf32>
    %c0_1 = arith.constant 0 : index
    %c0_2 = arith.constant 0 : index
    %1 = vector.load %arg1[%c0_1, %c0_2] : memref<784x128xf32, #tpu.memory_space<vmem>>, vector<784x128xf32>
    %cst = arith.constant dense<0.000000e+00> : vector<8x128xf32>
    %2 = tpu.matmul %0, %1, %cst {dimension_numbers = #tpu.dot_dimension_numbers<[1], [0], [0], [1], [0, 0, 1, 1], [], []>} : vector<8x784xf32>, vector<784x128xf32>, vector<8x128xf32> -> vector<8x128xf32>
    %c0_3 = arith.constant 0 : index
    %c0_4 = arith.constant 0 : index
    %3 = vector.load %arg2[%c0_3, %c0_4] : memref<1x128xf32, #tpu.memory_space<vmem>>, vector<1x128xf32>
    %4 = vector.broadcast %3 : vector<1x128xf32> to vector<8x128xf32>
    %5 = arith.addf %2, %4 : vector<8x128xf32>
    %c0_5 = arith.constant 0 : index
    %c0_6 = arith.constant 0 : index
    %6 = vector.load %arg3[%c0_5, %c0_6] : memref<1x128xf32, #tpu.memory_space<vmem>>, vector<1x128xf32>
    %7 = vector.extract_strided_slice %5 {offsets = [0, 0], sizes = [1, 128], strides = [1, 1]} : vector<8x128xf32> to vector<1x128xf32>
    %8 = math.tanh %7 : vector<1x128xf32>
    %9 = vector.extract_strided_slice %5 {offsets = [1, 0], sizes = [1, 128], strides = [1, 1]} : vector<8x128xf32> to vector<1x128xf32>
    %10 = arith.addf %9, %6 : vector<1x128xf32>
    %11 = math.tanh %8 : vector<1x128xf32>
    %12 = tpu.concatenate %8, %11 in 1 : vector<1x128xf32>, vector<1x128xf32> -> vector<1x256xf32>
    %c0_7 = arith.constant 0 : index
    %c0_8 = arith.constant 0 : index
    %13 = vector.load %arg4[%c0_7, %c0_8] : memref<256x128xf32, #tpu.memory_space<vmem>>, vector<256x128xf32>
    %cst_9 = arith.constant dense<0.000000e+00> : vector<1x128xf32>
    %14 = tpu.matmul %12, %13, %cst_9 {dimension_numbers = #tpu.dot_dimension_numbers<[1], [0], [0], [1], [0, 0, 1, 1], [], []>} : vector<1x256xf32>, vector<256x128xf32>, vector<1x128xf32> -> vector<1x128xf32>
    %15 = arith.addf %10, %14 : vector<1x128xf32>
    %16 = math.tanh %15 : vector<1x128xf32>
    %17 = vector.extract_strided_slice %5 {offsets = [2, 0], sizes = [1, 128], strides = [1, 1]} : vector<8x128xf32> to vector<1x128xf32>
    %18 = arith.addf %17, %6 : vector<1x128xf32>
    %19 = math.tanh %16 : vector<1x128xf32>
    %20 = tpu.concatenate %16, %19 in 1 : vector<1x128xf32>, vector<1x128xf32> -> vector<1x256xf32>
    %c0_10 = arith.constant 0 : index
    %c0_11 = arith.constant 0 : index
    %21 = vector.load %arg4[%c0_10, %c0_11] : memref<256x128xf32, #tpu.memory_space<vmem>>, vector<256x128xf32>
    %cst_12 = arith.constant dense<0.000000e+00> : vector<1x128xf32>
    %22 = tpu.matmul %20, %21, %cst_12 {dimension_numbers = #tpu.dot_dimension_numbers<[1], [0], [0], [1], [0, 0, 1, 1], [], []>} : vector<1x256xf32>, vector<256x128xf32>, vector<1x128xf32> -> vector<1x128xf32>
    %23 = arith.addf %18, %22 : vector<1x128xf32>
    %24 = math.tanh %23 : vector<1x128xf32>
    %25 = vector.extract_strided_slice %5 {offsets = [3, 0], sizes = [1, 128], strides = [1, 1]} : vector<8x128xf32> to vector<1x128xf32>
    %26 = arith.addf %25, %6 : vector<1x128xf32>
    %27 = math.tanh %24 : vector<1x128xf32>
    %28 = tpu.concatenate %24, %27 in 1 : vector<1x128xf32>, vector<1x128xf32> -> vector<1x256xf32>
    %c0_13 = arith.constant 0 : index
    %c0_14 = arith.constant 0 : index
    %29 = vector.load %arg4[%c0_13, %c0_14] : memref<256x128xf32, #tpu.memory_space<vmem>>, vector<256x128xf32>
    %cst_15 = arith.constant dense<0.000000e+00> : vector<1x128xf32>
    %30 = tpu.matmul %28, %29, %cst_15 {dimension_numbers = #tpu.dot_dimension_numbers<[1], [0], [0], [1], [0, 0, 1, 1], [], []>} : vector<1x256xf32>, vector<256x128xf32>, vector<1x128xf32> -> vector<1x128xf32>
    %31 = arith.addf %26, %30 : vector<1x128xf32>
    %32 = math.tanh %31 : vector<1x128xf32>
    %33 = vector.extract_strided_slice %5 {offsets = [4, 0], sizes = [1, 128], strides = [1, 1]} : vector<8x128xf32> to vector<1x128xf32>
    %34 = arith.addf %33, %6 : vector<1x128xf32>
    %35 = math.tanh %32 : vector<1x128xf32>
    %36 = tpu.concatenate %32, %35 in 1 : vector<1x128xf32>, vector<1x128xf32> -> vector<1x256xf32>
    %c0_16 = arith.constant 0 : index
    %c0_17 = arith.constant 0 : index
    %37 = vector.load %arg4[%c0_16, %c0_17] : memref<256x128xf32, #tpu.memory_space<vmem>>, vector<256x128xf32>
    %cst_18 = arith.constant dense<0.000000e+00> : vector<1x128xf32>
    %38 = tpu.matmul %36, %37, %cst_18 {dimension_numbers = #tpu.dot_dimension_numbers<[1], [0], [0], [1], [0, 0, 1, 1], [], []>} : vector<1x256xf32>, vector<256x128xf32>, vector<1x128xf32> -> vector<1x128xf32>
    %39 = arith.addf %34, %38 : vector<1x128xf32>
    %40 = math.tanh %39 : vector<1x128xf32>
    %41 = vector.extract_strided_slice %5 {offsets = [5, 0], sizes = [1, 128], strides = [1, 1]} : vector<8x128xf32> to vector<1x128xf32>
    %42 = arith.addf %41, %6 : vector<1x128xf32>
    %43 = math.tanh %40 : vector<1x128xf32>
    %44 = tpu.concatenate %40, %43 in 1 : vector<1x128xf32>, vector<1x128xf32> -> vector<1x256xf32>
    %c0_19 = arith.constant 0 : index
    %c0_20 = arith.constant 0 : index
    %45 = vector.load %arg4[%c0_19, %c0_20] : memref<256x128xf32, #tpu.memory_space<vmem>>, vector<256x128xf32>
    %cst_21 = arith.constant dense<0.000000e+00> : vector<1x128xf32>
    %46 = tpu.matmul %44, %45, %cst_21 {dimension_numbers = #tpu.dot_dimension_numbers<[1], [0], [0], [1], [0, 0, 1, 1], [], []>} : vector<1x256xf32>, vector<256x128xf32>, vector<1x128xf32> -> vector<1x128xf32>
    %47 = arith.addf %42, %46 : vector<1x128xf32>
    %48 = math.tanh %47 : vector<1x128xf32>
    %49 = vector.extract_strided_slice %5 {offsets = [6, 0], sizes = [1, 128], strides = [1, 1]} : vector<8x128xf32> to vector<1x128xf32>
    %50 = arith.addf %49, %6 : vector<1x128xf32>
    %51 = math.tanh %48 : vector<1x128xf32>
    %52 = tpu.concatenate %48, %51 in 1 : vector<1x128xf32>, vector<1x128xf32> -> vector<1x256xf32>
    %c0_22 = arith.constant 0 : index
    %c0_23 = arith.constant 0 : index
    %53 = vector.load %arg4[%c0_22, %c0_23] : memref<256x128xf32, #tpu.memory_space<vmem>>, vector<256x128xf32>
    %cst_24 = arith.constant dense<0.000000e+00> : vector<1x128xf32>
    %54 = tpu.matmul %52, %53, %cst_24 {dimension_numbers = #tpu.dot_dimension_numbers<[1], [0], [0], [1], [0, 0, 1, 1], [], []>} : vector<1x256xf32>, vector<256x128xf32>, vector<1x128xf32> -> vector<1x128xf32>
    %55 = arith.addf %50, %54 : vector<1x128xf32>
    %56 = math.tanh %55 : vector<1x128xf32>
    %57 = vector.extract_strided_slice %5 {offsets = [7, 0], sizes = [1, 128], strides = [1, 1]} : vector<8x128xf32> to vector<1x128xf32>
    %58 = arith.addf %57, %6 : vector<1x128xf32>
    %59 = math.tanh %56 : vector<1x128xf32>
    %60 = tpu.concatenate %56, %59 in 1 : vector<1x128xf32>, vector<1x128xf32> -> vector<1x256xf32>
    %c0_25 = arith.constant 0 : index
    %c0_26 = arith.constant 0 : index
    %61 = vector.load %arg4[%c0_25, %c0_26] : memref<256x128xf32, #tpu.memory_space<vmem>>, vector<256x128xf32>
    %cst_27 = arith.constant dense<0.000000e+00> : vector<1x128xf32>
    %62 = tpu.matmul %60, %61, %cst_27 {dimension_numbers = #tpu.dot_dimension_numbers<[1], [0], [0], [1], [0, 0, 1, 1], [], []>} : vector<1x256xf32>, vector<256x128xf32>, vector<1x128xf32> -> vector<1x128xf32>
    %63 = arith.addf %58, %62 : vector<1x128xf32>
    %64 = math.tanh %63 : vector<1x128xf32>
    %65 = math.tanh %64 : vector<1x128xf32>
    %66 = tpu.concatenate %64, %65 in 1 : vector<1x128xf32>, vector<1x128xf32> -> vector<1x256xf32>
    %c0_28 = arith.constant 0 : index
    %c0_29 = arith.constant 0 : index
    %67 = vector.load %arg4[%c0_28, %c0_29] : memref<256x128xf32, #tpu.memory_space<vmem>>, vector<256x128xf32>
    %cst_30 = arith.constant dense<0.000000e+00> : vector<1x128xf32>
    %68 = tpu.matmul %66, %67, %cst_30 {dimension_numbers = #tpu.dot_dimension_numbers<[1], [0], [0], [1], [0, 0, 1, 1], [], []>} : vector<1x256xf32>, vector<256x128xf32>, vector<1x128xf32> -> vector<1x128xf32>
    %69 = arith.addf %6, %68 : vector<1x128xf32>
    %70 = math.tanh %69 : vector<1x128xf32>
    %71 = tpu.concatenate %16, %24, %32, %40, %48, %56, %64, %70 in 0 : vector<1x128xf32>, vector<1x128xf32>, vector<1x128xf32>, vector<1x128xf32>, vector<1x128xf32>, vector<1x128xf32>, vector<1x128xf32>, vector<1x128xf32> -> vector<8x128xf32>
    %72 = vector.extract_strided_slice %71 {offsets = [0, 32], sizes = [8, 16], strides = [1, 1]} : vector<8x128xf32> to vector<8x16xf32>
    %c0_31 = arith.constant 0 : index
    %c0_32 = arith.constant 0 : index
    %73 = vector.load %arg5[%c0_31, %c0_32] : memref<8x16xf32, #tpu.memory_space<vmem>>, vector<8x16xf32>
    tpu.vector_store %arg5[%c0_31, %c0_32], %72 {strides = array<i32>} : memref<8x16xf32, #tpu.memory_space<vmem>>, vector<8x16xf32>,
    return
  }
}

</mosaic_0001>

<llo_original>
// kernel: tpu_custom_call.1
$region0: #{tpu_custom_call.1}
  #allocation0 [shape = 'u32[]', space=smem, size = 0x4, offset = 0x4, fixed_abs, tag = 'smem constant byte address 0x4 - core index']
  #allocation1 [shape = 'u32[72,128]{1,0:T(1,128)}', space=vmem, size = 0x9000, scoped, tag = 'internal scratch']
  %s0 = inlined_call_operand.hbm [shape: f32[8,784], index: 0, kind: input, shape index: {}]
  %s1 = inlined_call_operand.hbm [shape: f32[784,128], index: 1, kind: input, shape index: {}]
  %s2 = inlined_call_operand.vmem [shape: f32[1,128], index: 2, kind: input, shape index: {}]
  %s3 = inlined_call_operand.vmem [shape: f32[1,128], index: 3, kind: input, shape index: {}]
  %s4 = inlined_call_operand.hbm [shape: f32[256,128], index: 4, kind: input, shape index: {}]
  %s5 = inlined_call_operand.hbm [shape: f32[8,16], index: 5, kind: output, shape index: {}]
  %s6 = sld [smem:[#allocation0]]
  $region42: #{tpu_custom_call.1} parent=0
    _
  %s8 = ssub.s32 1, %s6
  %s9 = scalar_select 0, %s8, %s6
  $region1: #{tpu_custom_call.1} parent=0
    #allocation2 [shape = 'u8[28672]{0}', space=vmem, size = 0x7000, scoped, tag = 'input window, operand 0, single buffered']
    #allocation3 [shape = 's32[1]{0}', space=sflag, size = 0x4, scoped, tag = 'scoped memory for tpu_custom_call.1']
    #allocation4 [shape = 's32[1]{0}', space=sflag, size = 0x4, scoped, tag = 'scoped memory for tpu_custom_call.1']
    #allocation5 [shape = 'u8[401408]{0}', space=vmem, size = 0x62000, scoped, tag = 'input window, operand 1, single buffered']
    #allocation6 [shape = 's32[1]{0}', space=sflag, size = 0x4, scoped, tag = 'scoped memory for tpu_custom_call.1']
    #allocation7 [shape = 'u8[131072]{0}', space=vmem, size = 0x20000, scoped, tag = 'input window, operand 4, single buffered']
    #allocation8 [shape = 'u8[4096]{0}', space=vmem, size = 0x1000, scoped, tag = 'output window, operand 0, single buffered']
    %10 = vsyncpa [#allocation3], 0
    %11 = vsyncpa [#allocation6], 0
    %12 = vsyncpa [#allocation4], 0
    // Predicated region
    $region2: #{tpu_custom_call.1} parent=1 // pred_check
      _
    $region3: #{tpu_custom_call.1} parent=1 // pred_check_branch
      %14 = sbr.rel (0) target = $region5
    $region4: #{tpu_custom_call.1} parent=1 // pred_region
      %16 = vsyncadd [#allocation3], 0
      %s18 = sshll.u32 %s0, 4
      %s19 = int_to_ptr.hbm [resolvable:$true] %s18
      %s20 = sshll.u32 [#allocation2], 4
      %s21 = int_to_ptr.vmem [resolvable:$true] %s20
      %23 = dma.hbm_to_vmem [thread:$0]  %s19, 896, %s21, [#allocation3]
    $region5: #{tpu_custom_call.1} parent=1 // pred_fallthru
      _
    // Predicated region
    $region6: #{tpu_custom_call.1} parent=1 // pred_check
      _
    $region7: #{tpu_custom_call.1} parent=1 // pred_check_branch
      %25 = sbr.rel (0) target = $region9
    $region8: #{tpu_custom_call.1} parent=1 // pred_region
      %27 = vsyncadd [#allocation6], 0
      %s28 = sshll.u32 %s1, 4
      %s29 = int_to_ptr.hbm [resolvable:$true] %s28
      %s30 = sshll.u32 [#allocation5], 4
      %s31 = int_to_ptr.vmem [resolvable:$true] %s30
      %36 = dma.hbm_to_vmem [thread:$0]  %s29, 12544, %s31, [#allocation6], 128, 128, 8
    $region9: #{tpu_custom_call.1} parent=1 // pred_fallthru
      _
    // Predicated region
    $region10: #{tpu_custom_call.1} parent=1 // pred_check
      _
    $region11: #{tpu_custom_call.1} parent=1 // pred_check_branch
      %38 = sbr.rel (0) target = $region13
    $region12: #{tpu_custom_call.1} parent=1 // pred_region
      _
    $region13: #{tpu_custom_call.1} parent=1 // pred_fallthru
      _
    // Predicated region
    $region14: #{tpu_custom_call.1} parent=1 // pred_check
      _
    $region15: #{tpu_custom_call.1} parent=1 // pred_check_branch
      %40 = sbr.rel (0) target = $region17
    $region16: #{tpu_custom_call.1} parent=1 // pred_region
      _
    $region17: #{tpu_custom_call.1} parent=1 // pred_fallthru
      _
    // Predicated region
    $region18: #{tpu_custom_call.1} parent=1 // pred_check
      _
    $region19: #{tpu_custom_call.1} parent=1 // pred_check_branch
      %42 = sbr.rel (0) target = $region21
    $region20: #{tpu_custom_call.1} parent=1 // pred_region
      %44 = vsyncadd [#allocation6], 0
      %s45 = sshll.u32 %s4, 4
      %s46 = int_to_ptr.hbm [resolvable:$true] %s45
      %s47 = sshll.u32 [#allocation7], 4
      %s48 = int_to_ptr.vmem [resolvable:$true] %s47
      %53 = dma.hbm_to_vmem [thread:$0]  %s46, 4096, %s48, [#allocation6], 128, 128, 8
    $region21: #{tpu_custom_call.1} parent=1 // pred_fallthru
      _
    // Predicated region
    $region22: #{tpu_custom_call.1} parent=1 // pred_check
      _
    $region23: #{tpu_custom_call.1} parent=1 // pred_check_branch
      %55 = sbr.rel (0) target = $region25
    $region24: #{tpu_custom_call.1} parent=1 // pred_region
      %57 = dma.done [#allocation3], 896
    $region25: #{tpu_custom_call.1} parent=1 // pred_fallthru
      _
    // Predicated region
    $region26: #{tpu_custom_call.1} parent=1 // pred_check
      _
    $region27: #{tpu_custom_call.1} parent=1 // pred_check_branch
      %59 = sbr.rel (0) target = $region29
    $region28: #{tpu_custom_call.1} parent=1 // pred_region
      %61 = dma.done [#allocation6], 12544
    $region29: #{tpu_custom_call.1} parent=1 // pred_fallthru
      _
    // Predicated region
    $region30: #{tpu_custom_call.1} parent=1 // pred_check
      _
    $region31: #{tpu_custom_call.1} parent=1 // pred_check_branch
      %63 = sbr.rel (0) target = $region33
    $region32: #{tpu_custom_call.1} parent=1 // pred_region
      %65 = dma.done [#allocation6], 4096
    $region33: #{tpu_custom_call.1} parent=1 // pred_fallthru
      _
    %v66 = vld [vmem:[#allocation2] sm:$0xff]
    %v67 = vld [vmem:[#allocation2 + $0x8] sm:$0xff]
    %v68 = vld [vmem:[#allocation2 + $0x10] sm:$0xff]
    %v69 = vld [vmem:[#allocation2 + $0x18] sm:$0xff]
    %v70 = vld [vmem:[#allocation2 + $0x20] sm:$0xff]
    %v71 = vld [vmem:[#allocation2 + $0x28] sm:$0xff]
    %v72 = vld [vmem:[#allocation2 + $0x30] sm:$0xff]
    %v73 = vld [vmem:[#allocation5] sm:$0xff]
    %v74 = vld [vmem:[#allocation5 + $0x8] sm:$0xff]
    %v75 = vld [vmem:[#allocation5 + $0x10] sm:$0xff]
    %v76 = vld [vmem:[#allocation5 + $0x18] sm:$0xff]
    %v77 = vld [vmem:[#allocation5 + $0x20] sm:$0xff]
    %v78 = vld [vmem:[#allocation5 + $0x28] sm:$0xff]
    %v79 = vld [vmem:[#allocation5 + $0x30] sm:$0xff]
    %v80 = vld [vmem:[#allocation5 + $0x38] sm:$0xff]
    %v81 = vld [vmem:[#allocation5 + $0x40] sm:$0xff]
    %v82 = vld [vmem:[#allocation5 + $0x48] sm:$0xff]
    %v83 = vld [vmem:[#allocation5 + $0x50] sm:$0xff]
    %v84 = vld [vmem:[#allocation5 + $0x58] sm:$0xff]
    %v85 = vld [vmem:[#allocation5 + $0x60] sm:$0xff]
    %v86 = vld [vmem:[#allocation5 + $0x68] sm:$0xff]
    %v87 = vld [vmem:[#allocation5 + $0x70] sm:$0xff]
    %v88 = vld [vmem:[#allocation5 + $0x78] sm:$0xff]
    %v89 = vld [vmem:[#allocation5 + $0x80] sm:$0xff]
    %v90 = vld [vmem:[#allocation5 + $0x88] sm:$0xff]
    %v91 = vld [vmem:[#allocation5 + $0x90] sm:$0xff]
    %v92 = vld [vmem:[#allocation5 + $0x98] sm:$0xff]
    %v93 = vld [vmem:[#allocation5 + $0xa0] sm:$0xff]
    %v94 = vld [vmem:[#allocation5 + $0xa8] sm:$0xff]
    %v95 = vld [vmem:[#allocation5 + $0xb0] sm:$0xff]
    %v96 = vld [vmem:[#allocation5 + $0xb8] sm:$0xff]
    %v97 = vld [vmem:[#allocation5 + $0xc0] sm:$0xff]
    %v98 = vld [vmem:[#allocation5 + $0xc8] sm:$0xff]
    %v99 = vld [vmem:[#allocation5 + $0xd0] sm:$0xff]
    %v100 = vld [vmem:[#allocation5 + $0xd8] sm:$0xff]
    %v101 = vld [vmem:[#allocation5 + $0xe0] sm:$0xff]
    %v102 = vld [vmem:[#allocation5 + $0xe8] sm:$0xff]
    %v103 = vld [vmem:[#allocation5 + $0xf0] sm:$0xff]
    %v104 = vld [vmem:[#allocation5 + $0xf8] sm:$0xff]
    %v105 = vld [vmem:[#allocation5 + $0x100] sm:$0xff]
    %v106 = vld [vmem:[#allocation5 + $0x108] sm:$0xff]
    %v107 = vld [vmem:[#allocation5 + $0x110] sm:$0xff]
    %v108 = vld [vmem:[#allocation5 + $0x118] sm:$0xff]
    %v109 = vld [vmem:[#allocation5 + $0x120] sm:$0xff]
    %v110 = vld [vmem:[#allocation5 + $0x128] sm:$0xff]
    %v111 = vld [vmem:[#allocation5 + $0x130] sm:$0xff]
    %v112 = vld [vmem:[#allocation5 + $0x138] sm:$0xff]
    %v113 = vld [vmem:[#allocation5 + $0x140] sm:$0xff]
    %v114 = vld [vmem:[#allocation5 + $0x148] sm:$0xff]
    %v115 = vld [vmem:[#allocation5 + $0x150] sm:$0xff]
    %v116 = vld [vmem:[#allocation5 + $0x158] sm:$0xff]
    %v117 = vld [vmem:[#allocation5 + $0x160] sm:$0xff]
    %v118 = vld [vmem:[#allocation5 + $0x168] sm:$0xff]
    %v119 = vld [vmem:[#allocation5 + $0x170] sm:$0xff]
    %v120 = vld [vmem:[#allocation5 + $0x178] sm:$0xff]
    %v121 = vld [vmem:[#allocation5 + $0x180] sm:$0xff]
    %v122 = vld [vmem:[#allocation5 + $0x188] sm:$0xff]
    %v123 = vld [vmem:[#allocation5 + $0x190] sm:$0xff]
    %v124 = vld [vmem:[#allocation5 + $0x198] sm:$0xff]
    %v125 = vld [vmem:[#allocation5 + $0x1a0] sm:$0xff]
    %v126 = vld [vmem:[#allocation5 + $0x1a8] sm:$0xff]
    %v127 = vld [vmem:[#allocation5 + $0x1b0] sm:$0xff]
    %v128 = vld [vmem:[#allocation5 + $0x1b8] sm:$0xff]
    %v129 = vld [vmem:[#allocation5 + $0x1c0] sm:$0xff]
    %v130 = vld [vmem:[#allocation5 + $0x1c8] sm:$0xff]
    %v131 = vld [vmem:[#allocation5 + $0x1d0] sm:$0xff]
    %v132 = vld [vmem:[#allocation5 + $0x1d8] sm:$0xff]
    %v133 = vld [vmem:[#allocation5 + $0x1e0] sm:$0xff]
    %v134 = vld [vmem:[#allocation5 + $0x1e8] sm:$0xff]
    %v135 = vld [vmem:[#allocation5 + $0x1f0] sm:$0xff]
    %v136 = vld [vmem:[#allocation5 + $0x1f8] sm:$0xff]
    %v137 = vld [vmem:[#allocation5 + $0x200] sm:$0xff]
    %v138 = vld [vmem:[#allocation5 + $0x208] sm:$0xff]
    %v139 = vld [vmem:[#allocation5 + $0x210] sm:$0xff]
    %v140 = vld [vmem:[#allocation5 + $0x218] sm:$0xff]
    %v141 = vld [vmem:[#allocation5 + $0x220] sm:$0xff]
    %v142 = vld [vmem:[#allocation5 + $0x228] sm:$0xff]
    %v143 = vld [vmem:[#allocation5 + $0x230] sm:$0xff]
    %v144 = vld [vmem:[#allocation5 + $0x238] sm:$0xff]
    %v145 = vld [vmem:[#allocation5 + $0x240] sm:$0xff]
    %v146 = vld [vmem:[#allocation5 + $0x248] sm:$0xff]
    %v147 = vld [vmem:[#allocation5 + $0x250] sm:$0xff]
    %v148 = vld [vmem:[#allocation5 + $0x258] sm:$0xff]
    %v149 = vld [vmem:[#allocation5 + $0x260] sm:$0xff]
    %v150 = vld [vmem:[#allocation5 + $0x268] sm:$0xff]
    %v151 = vld [vmem:[#allocation5 + $0x270] sm:$0xff]
    %v152 = vld [vmem:[#allocation5 + $0x278] sm:$0xff]
    %v153 = vld [vmem:[#allocation5 + $0x280] sm:$0xff]
    %v154 = vld [vmem:[#allocation5 + $0x288] sm:$0xff]
    %v155 = vld [vmem:[#allocation5 + $0x290] sm:$0xff]
    %v156 = vld [vmem:[#allocation5 + $0x298] sm:$0xff]
    %v157 = vld [vmem:[#allocation5 + $0x2a0] sm:$0xff]
    %v158 = vld [vmem:[#allocation5 + $0x2a8] sm:$0xff]
    %v159 = vld [vmem:[#allocation5 + $0x2b0] sm:$0xff]
    %v160 = vld [vmem:[#allocation5 + $0x2b8] sm:$0xff]
    %v161 = vld [vmem:[#allocation5 + $0x2c0] sm:$0xff]
    %v162 = vld [vmem:[#allocation5 + $0x2c8] sm:$0xff]
    %v163 = vld [vmem:[#allocation5 + $0x2d0] sm:$0xff]
    %v164 = vld [vmem:[#allocation5 + $0x2d8] sm:$0xff]
    %v165 = vld [vmem:[#allocation5 + $0x2e0] sm:$0xff]
    %v166 = vld [vmem:[#allocation5 + $0x2e8] sm:$0xff]
    %v167 = vld [vmem:[#allocation5 + $0x2f0] sm:$0xff]
    %v168 = vld [vmem:[#allocation5 + $0x2f8] sm:$0xff]
    %v169 = vld [vmem:[#allocation5 + $0x300] sm:$0xff]
    %v170 = vld [vmem:[#allocation5 + $0x308] sm:$0xff]
    %v171 = vld [vmem:[%s2] sm:$0x1]
    %v173 = vperm.slane %v171, 0
    %vm175 = vcmask 130048
    %v177 = vsel %vm175, %v72, 0
    %179 = vmatpush.msra.mxu0 %v88
    %180 = vmatpush.msra.mxu0 %v87
    %181 = vmatpush.msra.mxu0 %v86
    %182 = vmatpush.msra.mxu0 %v85
    %183 = vmatpush.msra.mxu0 %v84
    %184 = vmatpush.msra.mxu0 %v83
    %185 = vmatpush.msra.mxu0 %v82
    %186 = vmatpush.msra.mxu0 %v81
    %187 = vmatpush.msra.mxu0 %v80
    %188 = vmatpush.msra.mxu0 %v79
    %189 = vmatpush.msra.mxu0 %v78
    %190 = vmatpush.msra.mxu0 %v77
    %191 = vmatpush.msra.mxu0 %v76
    %192 = vmatpush.msra.mxu0 %v75
    %193 = vmatpush.msra.mxu0 %v74
    %194 = vmatpush.msra.mxu0 %v73
    %195 = vmatmul.f32.gmra.mxu0 %v66
    %v196 = vpop.f32.mrf.mxu0
    %v197 = vadd.f32 %v173, %v196
    %198 = vdwg.mxu0
    %199 = vmatpush.msra.mxu0 %v104
    %200 = vmatpush.msra.mxu0 %v103
    %201 = vmatpush.msra.mxu0 %v102
    %202 = vmatpush.msra.mxu0 %v101
    %203 = vmatpush.msra.mxu0 %v100
    %204 = vmatpush.msra.mxu0 %v99
    %205 = vmatpush.msra.mxu0 %v98
    %206 = vmatpush.msra.mxu0 %v97
    %207 = vmatpush.msra.mxu0 %v96
    %208 = vmatpush.msra.mxu0 %v95
    %209 = vmatpush.msra.mxu0 %v94
    %210 = vmatpush.msra.mxu0 %v93
    %211 = vmatpush.msra.mxu0 %v92
    %212 = vmatpush.msra.mxu0 %v91
    %213 = vmatpush.msra.mxu0 %v90
    %214 = vmatpush.msra.mxu0 %v89
    %215 = vmatmul.f32.gmra.mxu0 %v67
    %v216 = vpop.f32.mrf.mxu0
    %v217 = vadd.f32 %v197, %v216
    %218 = vdwg.mxu0
    %219 = vmatpush.msra.mxu0 %v120
    %220 = vmatpush.msra.mxu0 %v119
    %221 = vmatpush.msra.mxu0 %v118
    %222 = vmatpush.msra.mxu0 %v117
    %223 = vmatpush.msra.mxu0 %v116
    %224 = vmatpush.msra.mxu0 %v115
    %225 = vmatpush.msra.mxu0 %v114
    %226 = vmatpush.msra.mxu0 %v113
    %227 = vmatpush.msra.mxu0 %v112
    %228 = vmatpush.msra.mxu0 %v111
    %229 = vmatpush.msra.mxu0 %v110
    %230 = vmatpush.msra.mxu0 %v109
    %231 = vmatpush.msra.mxu0 %v108
    %232 = vmatpush.msra.mxu0 %v107
    %233 = vmatpush.msra.mxu0 %v106
    %234 = vmatpush.msra.mxu0 %v105
    %235 = vmatmul.f32.gmra.mxu0 %v68
    %v236 = vpop.f32.mrf.mxu0
    %v237 = vadd.f32 %v217, %v236
    %238 = vdwg.mxu0
    %239 = vmatpush.msra.mxu0 %v136
    %240 = vmatpush.msra.mxu0 %v135
    %241 = vmatpush.msra.mxu0 %v134
    %242 = vmatpush.msra.mxu0 %v133
    %243 = vmatpush.msra.mxu0 %v132
    %244 = vmatpush.msra.mxu0 %v131
    %245 = vmatpush.msra.mxu0 %v130
    %246 = vmatpush.msra.mxu0 %v129
    %247 = vmatpush.msra.mxu0 %v128
    %248 = vmatpush.msra.mxu0 %v127
    %249 = vmatpush.msra.mxu0 %v126
    %250 = vmatpush.msra.mxu0 %v125
    %251 = vmatpush.msra.mxu0 %v124
    %252 = vmatpush.msra.mxu0 %v123
    %253 = vmatpush.msra.mxu0 %v122
    %254 = vmatpush.msra.mxu0 %v121
    %255 = vmatmul.f32.gmra.mxu0 %v69
    %v256 = vpop.f32.mrf.mxu0
    %v257 = vadd.f32 %v237, %v256
    %258 = vdwg.mxu0
    %259 = vmatpush.msra.mxu0 %v152
    %260 = vmatpush.msra.mxu0 %v151
    %261 = vmatpush.msra.mxu0 %v150
    %262 = vmatpush.msra.mxu0 %v149
    %263 = vmatpush.msra.mxu0 %v148
    %264 = vmatpush.msra.mxu0 %v147
    %265 = vmatpush.msra.mxu0 %v146
    %266 = vmatpush.msra.mxu0 %v145
    %267 = vmatpush.msra.mxu0 %v144
    %268 = vmatpush.msra.mxu0 %v143
    %269 = vmatpush.msra.mxu0 %v142
    %270 = vmatpush.msra.mxu0 %v141
    %271 = vmatpush.msra.mxu0 %v140
    %272 = vmatpush.msra.mxu0 %v139
    %273 = vmatpush.msra.mxu0 %v138
    %274 = vmatpush.msra.mxu0 %v137
    %275 = vmatmul.f32.gmra.mxu0 %v70
    %v276 = vpop.f32.mrf.mxu0
    %v277 = vadd.f32 %v257, %v276
    %278 = vdwg.mxu0
    %279 = vmatpush.msra.mxu0 %v168
    %280 = vmatpush.msra.mxu0 %v167
    %281 = vmatpush.msra.mxu0 %v166
    %282 = vmatpush.msra.mxu0 %v165
    %283 = vmatpush.msra.mxu0 %v164
    %284 = vmatpush.msra.mxu0 %v163
    %285 = vmatpush.msra.mxu0 %v162
    %286 = vmatpush.msra.mxu0 %v161
    %287 = vmatpush.msra.mxu0 %v160
    %288 = vmatpush.msra.mxu0 %v159
    %289 = vmatpush.msra.mxu0 %v158
    %290 = vmatpush.msra.mxu0 %v157
    %291 = vmatpush.msra.mxu0 %v156
    %292 = vmatpush.msra.mxu0 %v155
    %293 = vmatpush.msra.mxu0 %v154
    %294 = vmatpush.msra.mxu0 %v153
    %295 = vmatmul.f32.gmra.mxu0 %v71
    %v296 = vpop.f32.mrf.mxu0
    %v297 = vadd.f32 %v277, %v296
    %298 = vdwg.mxu0
    %299 = vmatpush.msra.mxu0 0.0
    %300 = vmatpush.msra.mxu0 0.0
    %301 = vmatpush.msra.mxu0 0.0
    %302 = vmatpush.msra.mxu0 0.0
    %303 = vmatpush.msra.mxu0 0.0
    %304 = vmatpush.msra.mxu0 0.0
    %305 = vmatpush.msra.mxu0 0.0
    %306 = vmatpush.msra.mxu0 0.0
    %307 = vmatpush.msra.mxu0 0.0
    %308 = vmatpush.msra.mxu0 0.0
    %309 = vmatpush.msra.mxu0 0.0
    %310 = vmatpush.msra.mxu0 0.0
    %311 = vmatpush.msra.mxu0 0.0
    %312 = vmatpush.msra.mxu0 0.0
    %313 = vmatpush.msra.mxu0 %v170
    %314 = vmatpush.msra.mxu0 %v169
    %315 = vmatmul.f32.gmra.mxu0 %v177
    %v316 = vpop.f32.mrf.mxu0
    %v317 = vadd.f32 %v297, %v316
    %318 = vdwg.mxu0
    %v319 = vld [vmem:[%s3] sm:$0x1]
    %v320 = vtanh.pop %v317
    %v322 = vperm.slane %v319, 0
    %v324 = vadd.f32 %v317, %v322
    %v325 = vtanh.pop %v320
    %v326 = vld [vmem:[#allocation7] sm:$0xff]
    %v327 = vld [vmem:[#allocation7 + $0x8] sm:$0xff]
    %v328 = vld [vmem:[#allocation7 + $0x10] sm:$0xff]
    %v329 = vld [vmem:[#allocation7 + $0x18] sm:$0xff]
    %v330 = vld [vmem:[#allocation7 + $0x20] sm:$0xff]
    %v331 = vld [vmem:[#allocation7 + $0x28] sm:$0xff]
    %v332 = vld [vmem:[#allocation7 + $0x30] sm:$0xff]
    %v333 = vld [vmem:[#allocation7 + $0x38] sm:$0xff]
    %v334 = vld [vmem:[#allocation7 + $0x40] sm:$0xff]
    %v335 = vld [vmem:[#allocation7 + $0x48] sm:$0xff]
    %v336 = vld [vmem:[#allocation7 + $0x50] sm:$0xff]
    %v337 = vld [vmem:[#allocation7 + $0x58] sm:$0xff]
    %v338 = vld [vmem:[#allocation7 + $0x60] sm:$0xff]
    %v339 = vld [vmem:[#allocation7 + $0x68] sm:$0xff]
    %v340 = vld [vmem:[#allocation7 + $0x70] sm:$0xff]
    %v341 = vld [vmem:[#allocation7 + $0x78] sm:$0xff]
    %v342 = vld [vmem:[#allocation7 + $0x80] sm:$0xff]
    %v343 = vld [vmem:[#allocation7 + $0x88] sm:$0xff]
    %v344 = vld [vmem:[#allocation7 + $0x90] sm:$0xff]
    %v345 = vld [vmem:[#allocation7 + $0x98] sm:$0xff]
    %v346 = vld [vmem:[#allocation7 + $0xa0] sm:$0xff]
    %v347 = vld [vmem:[#allocation7 + $0xa8] sm:$0xff]
    %v348 = vld [vmem:[#allocation7 + $0xb0] sm:$0xff]
    %v349 = vld [vmem:[#allocation7 + $0xb8] sm:$0xff]
    %v350 = vld [vmem:[#allocation7 + $0xc0] sm:$0xff]
    %v351 = vld [vmem:[#allocation7 + $0xc8] sm:$0xff]
    %v352 = vld [vmem:[#allocation7 + $0xd0] sm:$0xff]
    %v353 = vld [vmem:[#allocation7 + $0xd8] sm:$0xff]
    %v354 = vld [vmem:[#allocation7 + $0xe0] sm:$0xff]
    %v355 = vld [vmem:[#allocation7 + $0xe8] sm:$0xff]
    %v356 = vld [vmem:[#allocation7 + $0xf0] sm:$0xff]
    %v357 = vld [vmem:[#allocation7 + $0xf8] sm:$0xff]
    %358 = vmatpush.msra.mxu0 %v341
    %359 = vmatpush.msra.mxu0 %v340
    %360 = vmatpush.msra.mxu0 %v339
    %361 = vmatpush.msra.mxu0 %v338
    %362 = vmatpush.msra.mxu0 %v337
    %363 = vmatpush.msra.mxu0 %v336
    %364 = vmatpush.msra.mxu0 %v335
    %365 = vmatpush.msra.mxu0 %v334
    %366 = vmatpush.msra.mxu0 %v333
    %367 = vmatpush.msra.mxu0 %v332
    %368 = vmatpush.msra.mxu0 %v331
    %369 = vmatpush.msra.mxu0 %v330
    %370 = vmatpush.msra.mxu0 %v329
    %371 = vmatpush.msra.mxu0 %v328
    %372 = vmatpush.msra.mxu0 %v327
    %373 = vmatpush.msra.mxu0 %v326
    %374 = vmatmul.f32.gmra.mxu0 %v320
    %v375 = vpop.f32.mrf.mxu0
    %v376 = vadd.f32 0.0, %v375
    %377 = vdwg.mxu0
    %378 = vmatpush.msra.mxu0 %v357
    %379 = vmatpush.msra.mxu0 %v356
    %380 = vmatpush.msra.mxu0 %v355
    %381 = vmatpush.msra.mxu0 %v354
    %382 = vmatpush.msra.mxu0 %v353
    %383 = vmatpush.msra.mxu0 %v352
    %384 = vmatpush.msra.mxu0 %v351
    %385 = vmatpush.msra.mxu0 %v350
    %386 = vmatpush.msra.mxu0 %v349
    %387 = vmatpush.msra.mxu0 %v348
    %388 = vmatpush.msra.mxu0 %v347
    %389 = vmatpush.msra.mxu0 %v346
    %390 = vmatpush.msra.mxu0 %v345
    %391 = vmatpush.msra.mxu0 %v344
    %392 = vmatpush.msra.mxu0 %v343
    %393 = vmatpush.msra.mxu0 %v342
    %394 = vmatmul.f32.gmra.mxu0 %v325
    %v395 = vpop.f32.mrf.mxu0
    %v396 = vadd.f32 %v376, %v395
    %397 = vdwg.mxu0
    %v399 = vrot.slane %v396, 7
    %v401 = vadd.f32 %v324, %v399
    %v402 = vtanh.pop %v401
    %v403 = vtanh.pop %v402
    %v406 = vrot.slane %v402, 1
    %v407 = vrot.slane %v403, 1
    %410 = vmatpush.msra.mxu0 %v341
    %411 = vmatpush.msra.mxu0 %v340
    %412 = vmatpush.msra.mxu0 %v339
    %413 = vmatpush.msra.mxu0 %v338
    %414 = vmatpush.msra.mxu0 %v337
    %415 = vmatpush.msra.mxu0 %v336
    %416 = vmatpush.msra.mxu0 %v335
    %417 = vmatpush.msra.mxu0 %v334
    %418 = vmatpush.msra.mxu0 %v333
    %419 = vmatpush.msra.mxu0 %v332
    %420 = vmatpush.msra.mxu0 %v331
    %421 = vmatpush.msra.mxu0 %v330
    %422 = vmatpush.msra.mxu0 %v329
    %423 = vmatpush.msra.mxu0 %v328
    %424 = vmatpush.msra.mxu0 %v327
    %425 = vmatpush.msra.mxu0 %v326
    %426 = vmatmul.f32.gmra.mxu0 %v406
    %v427 = vpop.f32.mrf.mxu0
    %v428 = vadd.f32 0.0, %v427
    %429 = vdwg.mxu0
    %430 = vmatpush.msra.mxu0 %v357
    %431 = vmatpush.msra.mxu0 %v356
    %432 = vmatpush.msra.mxu0 %v355
    %433 = vmatpush.msra.mxu0 %v354
    %434 = vmatpush.msra.mxu0 %v353
    %435 = vmatpush.msra.mxu0 %v352
    %436 = vmatpush.msra.mxu0 %v351
    %437 = vmatpush.msra.mxu0 %v350
    %438 = vmatpush.msra.mxu0 %v349
    %439 = vmatpush.msra.mxu0 %v348
    %440 = vmatpush.msra.mxu0 %v347
    %441 = vmatpush.msra.mxu0 %v346
    %442 = vmatpush.msra.mxu0 %v345
    %443 = vmatpush.msra.mxu0 %v344
    %444 = vmatpush.msra.mxu0 %v343
    %445 = vmatpush.msra.mxu0 %v342
    %446 = vmatmul.f32.gmra.mxu0 %v407
    %v447 = vpop.f32.mrf.mxu0
    %v448 = vadd.f32 %v428, %v447
    %449 = vdwg.mxu0
    %v451 = vrot.slane %v448, 6
    %v453 = vadd.f32 %v324, %v451
    %v454 = vtanh.pop %v453
    %v455 = vtanh.pop %v454
    %v458 = vrot.slane %v454, 2
    %v459 = vrot.slane %v455, 2
    %462 = vmatpush.msra.mxu0 %v341
    %463 = vmatpush.msra.mxu0 %v340
    %464 = vmatpush.msra.mxu0 %v339
    %465 = vmatpush.msra.mxu0 %v338
    %466 = vmatpush.msra.mxu0 %v337
    %467 = vmatpush.msra.mxu0 %v336
    %468 = vmatpush.msra.mxu0 %v335
    %469 = vmatpush.msra.mxu0 %v334
    %470 = vmatpush.msra.mxu0 %v333
    %471 = vmatpush.msra.mxu0 %v332
    %472 = vmatpush.msra.mxu0 %v331
    %473 = vmatpush.msra.mxu0 %v330
    %474 = vmatpush.msra.mxu0 %v329
    %475 = vmatpush.msra.mxu0 %v328
    %476 = vmatpush.msra.mxu0 %v327
    %477 = vmatpush.msra.mxu0 %v326
    %478 = vmatmul.f32.gmra.mxu0 %v458
    %v479 = vpop.f32.mrf.mxu0
    %v480 = vadd.f32 0.0, %v479
    %481 = vdwg.mxu0
    %482 = vmatpush.msra.mxu0 %v357
    %483 = vmatpush.msra.mxu0 %v356
    %484 = vmatpush.msra.mxu0 %v355
    %485 = vmatpush.msra.mxu0 %v354
    %486 = vmatpush.msra.mxu0 %v353
    %487 = vmatpush.msra.mxu0 %v352
    %488 = vmatpush.msra.mxu0 %v351
    %489 = vmatpush.msra.mxu0 %v350
    %490 = vmatpush.msra.mxu0 %v349
    %491 = vmatpush.msra.mxu0 %v348
    %492 = vmatpush.msra.mxu0 %v347
    %493 = vmatpush.msra.mxu0 %v346
    %494 = vmatpush.msra.mxu0 %v345
    %495 = vmatpush.msra.mxu0 %v344
    %496 = vmatpush.msra.mxu0 %v343
    %497 = vmatpush.msra.mxu0 %v342
    %498 = vmatmul.f32.gmra.mxu0 %v459
    %v499 = vpop.f32.mrf.mxu0
    %v500 = vadd.f32 %v480, %v499
    %501 = vdwg.mxu0
    %v503 = vrot.slane %v500, 5
    %v505 = vadd.f32 %v324, %v503
    %v506 = vtanh.pop %v505
    %v507 = vtanh.pop %v506
    %v510 = vrot.slane %v506, 3
    %v511 = vrot.slane %v507, 3
    %514 = vmatpush.msra.mxu0 %v341
    %515 = vmatpush.msra.mxu0 %v340
    %516 = vmatpush.msra.mxu0 %v339
    %517 = vmatpush.msra.mxu0 %v338
    %518 = vmatpush.msra.mxu0 %v337
    %519 = vmatpush.msra.mxu0 %v336
    %520 = vmatpush.msra.mxu0 %v335
    %521 = vmatpush.msra.mxu0 %v334
    %522 = vmatpush.msra.mxu0 %v333
    %523 = vmatpush.msra.mxu0 %v332
    %524 = vmatpush.msra.mxu0 %v331
    %525 = vmatpush.msra.mxu0 %v330
    %526 = vmatpush.msra.mxu0 %v329
    %527 = vmatpush.msra.mxu0 %v328
    %528 = vmatpush.msra.mxu0 %v327
    %529 = vmatpush.msra.mxu0 %v326
    %530 = vmatmul.f32.gmra.mxu0 %v510
    %v531 = vpop.f32.mrf.mxu0
    %v532 = vadd.f32 0.0, %v531
    %533 = vdwg.mxu0
    %534 = vmatpush.msra.mxu0 %v357
    %535 = vmatpush.msra.mxu0 %v356
    %536 = vmatpush.msra.mxu0 %v355
    %537 = vmatpush.msra.mxu0 %v354
    %538 = vmatpush.msra.mxu0 %v353
    %539 = vmatpush.msra.mxu0 %v352
    %540 = vmatpush.msra.mxu0 %v351
    %541 = vmatpush.msra.mxu0 %v350
    %542 = vmatpush.msra.mxu0 %v349
    %543 = vmatpush.msra.mxu0 %v348
    %544 = vmatpush.msra.mxu0 %v347
    %545 = vmatpush.msra.mxu0 %v346
    %546 = vmatpush.msra.mxu0 %v345
    %547 = vmatpush.msra.mxu0 %v344
    %548 = vmatpush.msra.mxu0 %v343
    %549 = vmatpush.msra.mxu0 %v342
    %550 = vmatmul.f32.gmra.mxu0 %v511
    %v551 = vpop.f32.mrf.mxu0
    %v552 = vadd.f32 %v532, %v551
    %553 = vdwg.mxu0
    %v555 = vrot.slane %v552, 4
    %v557 = vadd.f32 %v324, %v555
    %v558 = vtanh.pop %v557
    %v559 = vtanh.pop %v558
    %v562 = vrot.slane %v558, 4
    %v563 = vrot.slane %v559, 4
    %566 = vmatpush.msra.mxu0 %v341
    %567 = vmatpush.msra.mxu0 %v340
    %568 = vmatpush.msra.mxu0 %v339
    %569 = vmatpush.msra.mxu0 %v338
    %570 = vmatpush.msra.mxu0 %v337
    %571 = vmatpush.msra.mxu0 %v336
    %572 = vmatpush.msra.mxu0 %v335
    %573 = vmatpush.msra.mxu0 %v334
    %574 = vmatpush.msra.mxu0 %v333
    %575 = vmatpush.msra.mxu0 %v332
    %576 = vmatpush.msra.mxu0 %v331
    %577 = vmatpush.msra.mxu0 %v330
    %578 = vmatpush.msra.mxu0 %v329
    %579 = vmatpush.msra.mxu0 %v328
    %580 = vmatpush.msra.mxu0 %v327
    %581 = vmatpush.msra.mxu0 %v326
    %582 = vmatmul.f32.gmra.mxu0 %v562
    %v583 = vpop.f32.mrf.mxu0
    %v584 = vadd.f32 0.0, %v583
    %585 = vdwg.mxu0
    %586 = vmatpush.msra.mxu0 %v357
    %587 = vmatpush.msra.mxu0 %v356
    %588 = vmatpush.msra.mxu0 %v355
    %589 = vmatpush.msra.mxu0 %v354
    %590 = vmatpush.msra.mxu0 %v353
    %591 = vmatpush.msra.mxu0 %v352
    %592 = vmatpush.msra.mxu0 %v351
    %593 = vmatpush.msra.mxu0 %v350
    %594 = vmatpush.msra.mxu0 %v349
    %595 = vmatpush.msra.mxu0 %v348
    %596 = vmatpush.msra.mxu0 %v347
    %597 = vmatpush.msra.mxu0 %v346
    %598 = vmatpush.msra.mxu0 %v345
    %599 = vmatpush.msra.mxu0 %v344
    %600 = vmatpush.msra.mxu0 %v343
    %601 = vmatpush.msra.mxu0 %v342
    %602 = vmatmul.f32.gmra.mxu0 %v563
    %v603 = vpop.f32.mrf.mxu0
    %v604 = vadd.f32 %v584, %v603
    %605 = vdwg.mxu0
    %v607 = vrot.slane %v604, 3
    %v609 = vadd.f32 %v324, %v607
    %v610 = vtanh.pop %v609
    %v611 = vtanh.pop %v610
    %v614 = vrot.slane %v610, 5
    %v615 = vrot.slane %v611, 5
    %618 = vmatpush.msra.mxu0 %v341
    %619 = vmatpush.msra.mxu0 %v340
    %620 = vmatpush.msra.mxu0 %v339
    %621 = vmatpush.msra.mxu0 %v338
    %622 = vmatpush.msra.mxu0 %v337
    %623 = vmatpush.msra.mxu0 %v336
    %624 = vmatpush.msra.mxu0 %v335
    %625 = vmatpush.msra.mxu0 %v334
    %626 = vmatpush.msra.mxu0 %v333
    %627 = vmatpush.msra.mxu0 %v332
    %628 = vmatpush.msra.mxu0 %v331
    %629 = vmatpush.msra.mxu0 %v330
    %630 = vmatpush.msra.mxu0 %v329
    %631 = vmatpush.msra.mxu0 %v328
    %632 = vmatpush.msra.mxu0 %v327
    %633 = vmatpush.msra.mxu0 %v326
    %634 = vmatmul.f32.gmra.mxu0 %v614
    %v635 = vpop.f32.mrf.mxu0
    %v636 = vadd.f32 0.0, %v635
    %637 = vdwg.mxu0
    %638 = vmatpush.msra.mxu0 %v357
    %639 = vmatpush.msra.mxu0 %v356
    %640 = vmatpush.msra.mxu0 %v355
    %641 = vmatpush.msra.mxu0 %v354
    %642 = vmatpush.msra.mxu0 %v353
    %643 = vmatpush.msra.mxu0 %v352
    %644 = vmatpush.msra.mxu0 %v351
    %645 = vmatpush.msra.mxu0 %v350
    %646 = vmatpush.msra.mxu0 %v349
    %647 = vmatpush.msra.mxu0 %v348
    %648 = vmatpush.msra.mxu0 %v347
    %649 = vmatpush.msra.mxu0 %v346
    %650 = vmatpush.msra.mxu0 %v345
    %651 = vmatpush.msra.mxu0 %v344
    %652 = vmatpush.msra.mxu0 %v343
    %653 = vmatpush.msra.mxu0 %v342
    %654 = vmatmul.f32.gmra.mxu0 %v615
    %v655 = vpop.f32.mrf.mxu0
    %v656 = vadd.f32 %v636, %v655
    %657 = vdwg.mxu0
    %v659 = vrot.slane %v656, 2
    %v661 = vadd.f32 %v324, %v659
    %v662 = vtanh.pop %v661
    %v663 = vtanh.pop %v662
    %v666 = vrot.slane %v662, 6
    %v667 = vrot.slane %v663, 6
    %670 = vmatpush.msra.mxu0 %v341
    %671 = vmatpush.msra.mxu0 %v340
    %672 = vmatpush.msra.mxu0 %v339
    %673 = vmatpush.msra.mxu0 %v338
    %674 = vmatpush.msra.mxu0 %v337
    %675 = vmatpush.msra.mxu0 %v336
    %676 = vmatpush.msra.mxu0 %v335
    %677 = vmatpush.msra.mxu0 %v334
    %678 = vmatpush.msra.mxu0 %v333
    %679 = vmatpush.msra.mxu0 %v332
    %680 = vmatpush.msra.mxu0 %v331
    %681 = vmatpush.msra.mxu0 %v330
    %682 = vmatpush.msra.mxu0 %v329
    %683 = vmatpush.msra.mxu0 %v328
    %684 = vmatpush.msra.mxu0 %v327
    %685 = vmatpush.msra.mxu0 %v326
    %686 = vmatmul.f32.gmra.mxu0 %v666
    %v687 = vpop.f32.mrf.mxu0
    %v688 = vadd.f32 0.0, %v687
    %689 = vdwg.mxu0
    %690 = vmatpush.msra.mxu0 %v357
    %691 = vmatpush.msra.mxu0 %v356
    %692 = vmatpush.msra.mxu0 %v355
    %693 = vmatpush.msra.mxu0 %v354
    %694 = vmatpush.msra.mxu0 %v353
    %695 = vmatpush.msra.mxu0 %v352
    %696 = vmatpush.msra.mxu0 %v351
    %697 = vmatpush.msra.mxu0 %v350
    %698 = vmatpush.msra.mxu0 %v349
    %699 = vmatpush.msra.mxu0 %v348
    %700 = vmatpush.msra.mxu0 %v347
    %701 = vmatpush.msra.mxu0 %v346
    %702 = vmatpush.msra.mxu0 %v345
    %703 = vmatpush.msra.mxu0 %v344
    %704 = vmatpush.msra.mxu0 %v343
    %705 = vmatpush.msra.mxu0 %v342
    %706 = vmatmul.f32.gmra.mxu0 %v667
    %v707 = vpop.f32.mrf.mxu0
    %v708 = vadd.f32 %v688, %v707
    %709 = vdwg.mxu0
    %v711 = vrot.slane %v708, 1
    %v713 = vadd.f32 %v324, %v711
    %v714 = vtanh.pop %v713
    %v715 = vtanh.pop %v714
    %v718 = vrot.slane %v714, 7
    %v719 = vrot.slane %v715, 7
    %722 = vmatpush.msra.mxu0 %v341
    %723 = vmatpush.msra.mxu0 %v340
    %724 = vmatpush.msra.mxu0 %v339
    %725 = vmatpush.msra.mxu0 %v338
    %726 = vmatpush.msra.mxu0 %v337
    %727 = vmatpush.msra.mxu0 %v336
    %728 = vmatpush.msra.mxu0 %v335
    %729 = vmatpush.msra.mxu0 %v334
    %730 = vmatpush.msra.mxu0 %v333
    %731 = vmatpush.msra.mxu0 %v332
    %732 = vmatpush.msra.mxu0 %v331
    %733 = vmatpush.msra.mxu0 %v330
    %734 = vmatpush.msra.mxu0 %v329
    %735 = vmatpush.msra.mxu0 %v328
    %736 = vmatpush.msra.mxu0 %v327
    %737 = vmatpush.msra.mxu0 %v326
    %738 = vmatmul.f32.gmra.mxu0 %v718
    %v739 = vpop.f32.mrf.mxu0
    %v740 = vadd.f32 0.0, %v739
    %741 = vdwg.mxu0
    %742 = vmatpush.msra.mxu0 %v357
    %743 = vmatpush.msra.mxu0 %v356
    %744 = vmatpush.msra.mxu0 %v355
    %745 = vmatpush.msra.mxu0 %v354
    %746 = vmatpush.msra.mxu0 %v353
    %747 = vmatpush.msra.mxu0 %v352
    %748 = vmatpush.msra.mxu0 %v351
    %749 = vmatpush.msra.mxu0 %v350
    %750 = vmatpush.msra.mxu0 %v349
    %751 = vmatpush.msra.mxu0 %v348
    %752 = vmatpush.msra.mxu0 %v347
    %753 = vmatpush.msra.mxu0 %v346
    %754 = vmatpush.msra.mxu0 %v345
    %755 = vmatpush.msra.mxu0 %v344
    %756 = vmatpush.msra.mxu0 %v343
    %757 = vmatpush.msra.mxu0 %v342
    %758 = vmatmul.f32.gmra.mxu0 %v719
    %v759 = vpop.f32.mrf.mxu0
    %v760 = vadd.f32 %v740, %v759
    %761 = vdwg.mxu0
    %v762 = vadd.f32 %v319, %v760
    %v763 = vtanh.pop %v762
    %v764 = vrot.slane %v454, 1
    %v766 = vrot.slane %v506, 1
    %v768 = vrot.slane %v558, 1
    %v770 = vrot.slane %v610, 1
    %v772 = vrot.slane %v662, 1
    %v774 = vrot.slane %v714, 1
    %v777 = vperm.slane %v763, 0
    %vm779 = vcmask 1040384
    %v780 = vsel %vm779, %v406, %v764
    %vm781 = vcmask 1041408
    %v782 = vsel %vm781, %v780, %v766
    %vm783 = vcmask 1042432
    %v784 = vsel %vm783, %v782, %v768
    %vm785 = vcmask 1043456
    %v786 = vsel %vm785, %v784, %v770
    %vm787 = vcmask 1044480
    %v788 = vsel %vm787, %v786, %v772
    %vm789 = vcmask 1045504
    %v790 = vsel %vm789, %v788, %v774
    %vm791 = vcmask 1046528
    %v792 = vsel %vm791, %v790, %v777
    %794 = vrot.lane.b32.xlu0 %v792, 96
    %v795 = vpop.permute.xlu0 %794
    %797 = vst.msk [vmem:[#allocation8] sm:$0xff] %vm175, %v795
    // Predicated region
    $region34: #{tpu_custom_call.1} parent=1 // pred_check
      _
    $region35: #{tpu_custom_call.1} parent=1 // pred_check_branch
      %799 = sbr.rel (0) target = $region37
    $region36: #{tpu_custom_call.1} parent=1 // pred_region
      %801 = vsyncadd [#allocation4], 0
      %s803 = sshll.u32 [#allocation8], 4
      %s804 = int_to_ptr.vmem [resolvable:$true] %s803
      %s805 = sshll.u32 %s5, 4
      %s806 = int_to_ptr.hbm [resolvable:$true] %s805
      %808 = dma.vmem_to_hbm [thread:$0]  %s804, 128, %s806, [#allocation4]
    $region37: #{tpu_custom_call.1} parent=1 // pred_fallthru
      _
    // Predicated region
    $region38: #{tpu_custom_call.1} parent=1 // pred_check
      _
    $region39: #{tpu_custom_call.1} parent=1 // pred_check_branch
      %810 = sbr.rel (0) target = $region41
    $region40: #{tpu_custom_call.1} parent=1 // pred_region
      %812 = dma.done [#allocation4], 128
    $region41: #{tpu_custom_call.1} parent=1 // pred_fallthru
      _
    %813 = vsyncpa [#allocation3], 1
    %814 = vsyncpa [#allocation6], 1
    %815 = vsyncpa [#allocation4], 1

</llo_original>
